<compile_context>
chip_gen: v7x
topology: tpu7x:2x2x1
jax: 0.10.0
libtpu: 0.0.40
codegen_flags: <defaults>
</compile_context>

<pallas_src>
import functools
import math

import jax
import jax.numpy as jnp
from jax.experimental import pallas as pl
from jax.experimental.pallas import tpu as pltpu

_LANE = 128
_SUBLANE = 8
_MAX_TM = 8192                       # 8192 rows * 128 lanes * 4 B = 4 MiB f32 block

_PARALLEL = "parallel"
_ARBITRARY = "arbitrary"
_CORE_PARALLEL = getattr(pltpu, "CORE_PARALLEL", _ARBITRARY)


# ------------------------------ hardware info --------------------------------

@functools.lru_cache(maxsize=None)
def _tpu_info():
    try:
        return pltpu.get_tpu_info()
    except Exception:
        return None


def _num_tensorcores():
    info = _tpu_info()
    for name in ("num_cores", "core_count", "num_tensorcores",
                 "tensorcore_count", "num_tensor_cores", "cores_per_chip"):
        v = getattr(info, name, None)
        if isinstance(v, int) and v >= 1:
            return v
    return 1


def _vmem_limit_bytes():
    cap = getattr(_tpu_info(), "vmem_capacity_bytes", None)
    if not isinstance(cap, int) or cap <= 0:
        cap = 64 * 1024 * 1024              # assume the smallest (v7x) if unknown
    return int(min(max(cap - 16 * 1024 * 1024, 32 * 1024 * 1024),
                   100 * 1024 * 1024))


def _round_up(x, m):
    return -(-x // m) * m


def _tile_rows(rows, n_streams):
    """Largest row tile that keeps streams x 2 buffers x block within budget."""
    budget = _vmem_limit_bytes() - 4 * 1024 * 1024
    per_stream = max(budget // (2 * max(n_streams, 1)), _SUBLANE * _LANE * 4)
    tm = (per_stream // (_LANE * 4)) // _SUBLANE * _SUBLANE
    tm = max(_SUBLANE, min(tm, _MAX_TM))
    return min(tm, _round_up(rows, _SUBLANE))


def _core_split(nblk, require_divisible=False):
    cores = _num_tensorcores()
    if cores >= 2 and nblk >= cores and not (require_divisible and nblk % cores):
        return cores, pl.cdiv(nblk, cores)
    return 1, nblk


def _flat2d(x):
    """(rows, 128) view of the 128-aligned prefix + flat tail (no pad copies)."""
    flat = x.reshape(-1)
    n = flat.shape[0]
    rows = n // _LANE
    n128 = rows * _LANE
    if n128 == n:
        return flat.reshape(rows, _LANE), None
    return flat[:n128].reshape(rows, _LANE), flat[n128:]


# --------------------------------- kernels ------------------------------------

def _l1_none_kernel(p_ref, t_ref, o_ref, *, loss_weight):
    d = jnp.abs(p_ref[...].astype(jnp.float32) - t_ref[...].astype(jnp.float32))
    o_ref[...] = (loss_weight * d).astype(o_ref.dtype)


def _l1_none_w_kernel(p_ref, t_ref, w_ref, o_ref, *, loss_weight):
    # Shape agnostic: w_ref's block may be smaller (1 on broadcast axes) and is
    # broadcast on the VPU, so non-full weights never become a full HBM stream.
    d = jnp.abs(p_ref[...].astype(jnp.float32) - t_ref[...].astype(jnp.float32))
    o_ref[...] = (loss_weight * d * w_ref[...].astype(jnp.float32)).astype(o_ref.dtype)


def _l1_none_ws_kernel(p_ref, t_ref, w_ref, o_ref, *, loss_weight):
    # Scalar weight lives in SMEM; no third full-size HBM stream.
    scale = loss_weight * w_ref[0, 0]
    d = jnp.abs(p_ref[...].astype(jnp.float32) - t_ref[...].astype(jnp.float32))
    o_ref[...] = (scale * d).astype(o_ref.dtype)


def _row_mask(block_rows, total_rows, multi_core):
    """Validity mask for a (block_rows, 128) block of a (total_rows, 128) array."""
    if multi_core:
        blk = pl.program_id(0) * pl.num_programs(1) + pl.program_id(1)
    else:
        blk = pl.program_id(0)
    rows = jax.lax.broadcasted_iota(jnp.int32, (block_rows, 1), 0)
    return (blk * block_rows + rows) < total_rows


def _l1_sum_kernel(p_ref, t_ref, o_ref, *, block_rows, total_rows,
                   needs_mask, multi_core):
    step = pl.program_id(1) if multi_core else pl.program_id(0)

    @pl.when(step == 0)
    def _():
        o_ref[...] = jnp.zeros_like(o_ref)

    d = jnp.abs(p_ref[...].astype(jnp.float32) - t_ref[...].astype(jnp.float32))
    if needs_mask:
        d = jnp.where(_row_mask(block_rows, total_rows, multi_core), d, 0.0)
    # Per-step cross-sublane reduce is hidden under the HBM DMA (mem-bound).
    o_ref[...] += jnp.sum(d, axis=0, keepdims=True)


def _l1_sum_w_kernel(p_ref, t_ref, w_ref, o_ref, wsum_ref, *, block_rows,
                     total_rows, needs_mask, multi_core):
    step = pl.program_id(1) if multi_core else pl.program_id(0)

    @pl.when(step == 0)
    def _():
        o_ref[...] = jnp.zeros_like(o_ref)
        wsum_ref[...] = jnp.zeros_like(wsum_ref)

    w = w_ref[...].astype(jnp.float32)
    dw = jnp.abs(p_ref[...].astype(jnp.float32)
                 - t_ref[...].astype(jnp.float32)) * w
    if needs_mask:
        m = _row_mask(block_rows, total_rows, multi_core)
        dw = jnp.where(m, dw, 0.0)
        w = jnp.where(m, w, 0.0)
    o_ref[...] += jnp.sum(dw, axis=0, keepdims=True)
    wsum_ref[...] += jnp.sum(w, axis=0, keepdims=True)


def _l1_bcast_sum_kernel(p_ref, t_ref, w_ref, o_ref, *, b0, b1, d0, d1,
                         mask0, mask1):
    # 3-D blocks: pred/target (b0, b1, d2); weight block is 1 on its broadcast
    # axes and is broadcast by the VPU multiply.  Accumulator (b0, 1, d2) stays
    # resident across the whole grid; partial edge blocks are masked.
    @pl.when((pl.program_id(0) == 0) & (pl.program_id(1) == 0))
    def _():
        o_ref[...] = jnp.zeros_like(o_ref)

    prod = (jnp.abs(p_ref[...].astype(jnp.float32)
                    - t_ref[...].astype(jnp.float32))
            * w_ref[...].astype(jnp.float32))
    if mask0 or mask1:
        ok = None
        if mask0:
            i0 = jax.lax.broadcasted_iota(jnp.int32, (b0, b1, 1), 0)
            ok = (pl.program_id(0) * b0 + i0) < d0
        if mask1:
            i1 = jax.lax.broadcasted_iota(jnp.int32, (b0, b1, 1), 1)
            ok1 = (pl.program_id(1) * b1 + i1) < d1
            ok = ok1 if ok is None else (ok & ok1)
        prod = jnp.where(ok, prod, 0.0)
    o_ref[...] += jnp.sum(prod, axis=1, keepdims=True)


# ----------------------- flat (rows, 128) wrappers ----------------------------

def _l1_none_flat(pred, target, weight, loss_weight, out_dtype, tile_rows=None):
    """reduction='none' for no / scalar / full-shape weights."""
    scalar_w = weight is not None and weight.size == 1
    full_w = weight is not None and not scalar_w

    p2, p_tail = _flat2d(pred)
    t2, t_tail = _flat2d(target)
    w2 = w_tail = None
    if full_w:
        w2, w_tail = _flat2d(weight)
    rows = p2.shape[0]

    body = None
    if rows > 0:
        n_streams = 4 if full_w else 3
        if tile_rows is None:
            tm = _tile_rows(rows, n_streams)
        else:
            tm = max(_SUBLANE, (int(tile_rows) // _SUBLANE) * _SUBLANE)
            tm = min(tm, _round_up(rows, _SUBLANE))
        nblk = pl.cdiv(rows, tm)
        slots, steps = _core_split(nblk, require_divisible=True)
        multi = slots > 1

        if multi:
            grid = (slots, steps)
            idx = lambda c, i: (c * steps + i, 0)
            sems = (_CORE_PARALLEL, _PARALLEL)
        else:
            grid = (nblk,)
            idx = lambda i: (i, 0)
            sems = (_PARALLEL,)

        spec = pl.BlockSpec((tm, _LANE), idx)
        cp = pltpu.CompilerParams(dimension_semantics=sems,
                                  vmem_limit_bytes=_vmem_limit_bytes())
        out_shape = jax.ShapeDtypeStruct((rows, _LANE), out_dtype)

        if full_w:
            body = pl.pallas_call(
                functools.partial(_l1_none_w_kernel, loss_weight=loss_weight),
                out_shape=out_shape, grid=grid,
                in_specs=[spec, spec, spec], out_specs=spec,
                compiler_params=cp)(p2, t2, w2)
        elif scalar_w:
            w_s = jnp.reshape(weight, (1, 1)).astype(jnp.float32)
            smem = pl.BlockSpec(memory_space=pltpu.MemorySpace.SMEM)
            body = pl.pallas_call(
                functools.partial(_l1_none_ws_kernel, loss_weight=loss_weight),
                out_shape=out_shape, grid=grid,
                in_specs=[spec, spec, smem], out_specs=spec,
                compiler_params=cp)(p2, t2, w_s)
        else:
            body = pl.pallas_call(
                functools.partial(_l1_none_kernel, loss_weight=loss_weight),
                out_shape=out_shape, grid=grid,
                in_specs=[spec, spec], out_specs=spec,
                compiler_params=cp)(p2, t2)

    if p_tail is None:
        return body.reshape(pred.shape)

    # Non-128-aligned tail (< 128 elements) computed in plain JAX.
    td = jnp.abs(p_tail.astype(jnp.float32) - t_tail.astype(jnp.float32))
    if full_w:
        td = td * w_tail.astype(jnp.float32)
    elif scalar_w:
        td = td * jnp.reshape(weight, ()).astype(jnp.float32)
    tail = (loss_weight * td).astype(out_dtype)
    # TODO(synk): this concatenate copies the kernel output once for
    # non-128-aligned sizes; 128-aligned inputs take the copy-free branch above.
    pieces = ([body.reshape(-1)] if body is not None else []) + [tail]
    return jnp.concatenate(pieces).reshape(pred.shape)


def _l1_sum_flat(pred, target, weight, tile_rows=None):
    """Returns (sum(|pred-target| * w), sum(w)) as f32 scalars (w: None or full)."""
    p2, p_tail = _flat2d(pred)
    t2, t_tail = _flat2d(target)
    w2 = w_tail = None
    if weight is not None:
        w2, w_tail = _flat2d(weight)
    rows = p2.shape[0]

    loss_sum = jnp.float32(0.0)
    w_sum = jnp.float32(0.0) if weight is not None else None

    if rows > 0:
        n_streams = 2 if weight is None else 3
        if tile_rows is None:
            tm = _tile_rows(rows, n_streams)
        else:
            tm = max(_SUBLANE, (int(tile_rows) // _SUBLANE) * _SUBLANE)
            tm = min(tm, _round_up(rows, _SUBLANE))
        nblk = pl.cdiv(rows, tm)
        slots, steps = _core_split(nblk)
        multi = slots > 1
        needs_mask = (rows % tm != 0) or (multi and slots * steps != nblk)

        if multi:
            grid = (slots, steps)
            # Clamp the block index so the (masked-out) overflow block of the
            # last core never DMAs out of range.
            in_idx = lambda c, i: (jnp.minimum(c * steps + i, nblk - 1), 0)
            acc_idx = lambda c, i: (c, 0)
            sems = (_CORE_PARALLEL, _ARBITRARY)
        else:
            grid = (nblk,)
            in_idx = lambda i: (i, 0)
            acc_idx = lambda i: (0, 0)
            sems = (_ARBITRARY,)

        in_spec = pl.BlockSpec((tm, _LANE), in_idx)
        acc_spec = pl.BlockSpec((1, _LANE), acc_idx)
        acc_shape = jax.ShapeDtypeStruct((slots, _LANE), jnp.float32)
        cp = pltpu.CompilerParams(dimension_semantics=sems,
                                  vmem_limit_bytes=_vmem_limit_bytes())
        kw = dict(block_rows=tm, total_rows=rows,
                  needs_mask=needs_mask, multi_core=multi)

        if weight is None:
            acc = pl.pallas_call(
                functools.partial(_l1_sum_kernel, **kw),
                out_shape=acc_shape, grid=grid,
                in_specs=[in_spec, in_spec], out_specs=acc_spec,
                compiler_params=cp)(p2, t2)
            loss_sum = jnp.sum(acc)
        else:
            acc, wacc = pl.pallas_call(
                functools.partial(_l1_sum_w_kernel, **kw),
                out_shape=(acc_shape, acc_shape), grid=grid,
                in_specs=[in_spec, in_spec, in_spec],
                out_specs=(acc_spec, acc_spec),
                compiler_params=cp)(p2, t2, w2)
            loss_sum = jnp.sum(acc)
            w_sum = jnp.sum(wacc)

    if p_tail is not None:
        td = jnp.abs(p_tail.astype(jnp.float32) - t_tail.astype(jnp.float32))
        if weight is None:
            loss_sum = loss_sum + jnp.sum(td)
        else:
            wt = w_tail.astype(jnp.float32)
            loss_sum = loss_sum + jnp.sum(td * wt)
            w_sum = w_sum + jnp.sum(wt)
    return loss_sum, w_sum


# ----------------- broadcastable (small) weights, no full stream ---------------

def _bcast_decomposition(pred_shape, w_shape):
    """Collapse pred/weight into <=3 aligned axis groups.

    Returns (p3, w3) with len 3 and w3[k] in {1, p3[k]}, or None when the
    broadcast pattern needs more than 3 collapsed groups / is incompatible.
    """
    rank = len(pred_shape)
    if len(w_shape) > rank:
        return None
    w_shape = (1,) * (rank - len(w_shape)) + tuple(int(d) for d in w_shape)
    pred_shape = tuple(int(d) for d in pred_shape)

    runs = []                                   # [role, pred_prod, w_prod]
    for dp, dw in zip(pred_shape, w_shape):
        if dw != 1 and dw != dp:
            return None                         # not broadcastable to pred
        if dp == 1:
            role = "*"
        elif dw == dp:
            role = "m"
        else:
            role = "b"
        if runs and (role == "*" or runs[-1][0] == "*" or runs[-1][0] == role):
            if runs[-1][0] == "*":
                runs[-1][0] = role
            runs[-1][1] *= dp
            runs[-1][2] *= dw
        else:
            runs.append([role, dp, dw])
    if len(runs) > 3:
        return None
    while len(runs) < 3:
        runs.insert(0, ["*", 1, 1])
    return tuple(r[1] for r in runs), tuple(r[2] for r in runs)


def _bcast_blocks(d0, d1, d2, n_streams):
    budget = _vmem_limit_bytes() - 4 * 1024 * 1024
    per_stream = max(budget // (2 * max(n_streams, 1)), _LANE * 4)
    row_bytes = max(d2, 1) * 4
    if row_bytes > per_stream:
        return None                             # inner group alone busts the budget
    if d1 * row_bytes <= per_stream:
        b1 = d1
        b0 = max(1, min(d0, per_stream // (d1 * row_bytes)))
    else:
        b0 = 1
        b1 = max(_SUBLANE, (per_stream // row_bytes) // _SUBLANE * _SUBLANE)
        b1 = min(b1, _round_up(d1, _SUBLANE))
    return b0, b1


def _make_w_index(m0, m1):
    def idx(i, j):
        return (i if m0 else 0, j if m1 else 0, 0)
    return idx


def _bcast_specs(p3, w3, n_streams):
    d0, d1, d2 = p3
    blocks = _bcast_blocks(d0, d1, d2, n_streams)
    if blocks is None:
        return None
    b0, b1 = blocks
    grid = (pl.cdiv(d0, b0), pl.cdiv(d1, b1))
    m0 = w3[0] == d0
    m1 = w3[1] == d1
    wb = (b0 if m0 else 1, b1 if m1 else 1, d2 if w3[2] == d2 else 1)
    data_spec = pl.BlockSpec((b0, b1, d2), lambda i, j: (i, j, 0))
    w_spec = pl.BlockSpec(wb, _make_w_index(m0, m1))
    return b0, b1, grid, data_spec, w_spec


def _l1_sum_bcast(pred, target, weight, p3, w3):
    specs = _bcast_specs(p3, w3, 3)
    if specs is None:
        return None
    b0, b1, grid, data_spec, w_spec = specs
    d0, d1, d2 = p3
    acc_spec = pl.BlockSpec((b0, 1, d2), lambda i, j: (0, 0, 0))
    cp = pltpu.CompilerParams(dimension_semantics=(_ARBITRARY, _ARBITRARY),
                              vmem_limit_bytes=_vmem_limit_bytes())
    acc = pl.pallas_call(
        functools.partial(_l1_bcast_sum_kernel, b0=b0, b1=b1, d0=d0, d1=d1,
                          mask0=(d0 % b0) != 0, mask1=(d1 % b1) != 0),
        out_shape=jax.ShapeDtypeStruct((b0, 1, d2), jnp.float32),
        grid=grid,
        in_specs=[data_spec, data_spec, w_spec],
        out_specs=acc_spec,
        compiler_params=cp,
    )(pred.reshape(p3), target.reshape(p3), weight.reshape(w3))
    return jnp.sum(acc)


def _l1_none_bcast(pred, target, weight, p3, w3, loss_weight, out_dtype):
    specs = _bcast_specs(p3, w3, 4)
    if specs is None:
        return None
    _, _, grid, data_spec, w_spec = specs
    cp = pltpu.CompilerParams(dimension_semantics=(_PARALLEL, _PARALLEL),
                              vmem_limit_bytes=_vmem_limit_bytes())
    out = pl.pallas_call(
        functools.partial(_l1_none_w_kernel, loss_weight=loss_weight),
        out_shape=jax.ShapeDtypeStruct(p3, out_dtype),
        grid=grid,
        in_specs=[data_spec, data_spec, w_spec],
        out_specs=data_spec,
        compiler_params=cp,
    )(pred.reshape(p3), target.reshape(p3), weight.reshape(w3))
    return out.reshape(pred.shape)


def _weight_denominator(weight, pred_shape):
    """basicsr.weight_reduce_loss denominator for reduction='mean'."""
    ws = jnp.sum(weight.astype(jnp.float32))
    if weight.ndim >= 2 and len(pred_shape) >= 2:
        # denom = weight.sum() if weight.size(1) > 1 else weight.sum() * C
        return ws * pred_shape[1] if weight.shape[1] == 1 else ws
    # TODO(synk): basicsr requires weight.dim() == loss.dim() (it would raise for
    # 0-d weights); we generalize to the sum of the broadcast weight instead.
    return ws * (math.prod(pred_shape) // max(weight.size, 1))


# ---------------------------------- module ------------------------------------

class L1Loss:
    """L1 (MAE) loss, matching basicsr.losses.losses.L1Loss forward semantics."""

    _reduction_modes = ["none", "mean", "sum"]

    def __init__(self, loss_weight=1.0, reduction="mean"):
        if reduction not in self._reduction_modes:
            raise ValueError(
                f"Unsupported reduction mode: {reduction}. "
                f"Supported ones are: {self._reduction_modes}")
        self.loss_weight = float(loss_weight)
        self.reduction = reduction

    def __call__(self, pred, target, weight=None, **kwargs):
        pred = jnp.asarray(pred)
        target = jnp.asarray(target)
        if target.shape != pred.shape:
            target = jnp.broadcast_to(target, pred.shape)
        if weight is not None:
            weight = jnp.asarray(weight)
        weight_orig = weight

        out_dtype = jnp.result_type(pred.dtype, target.dtype)
        if weight is not None:
            out_dtype = jnp.result_type(out_dtype, weight.dtype)
        if not jnp.issubdtype(out_dtype, jnp.floating):
            out_dtype = jnp.float32

        lw = self.loss_weight
        n = pred.size

        # Classify the weight so broadcastable weights never become a full-size
        # HBM stream.
        p3 = w3 = None
        if weight is None:
            wkind = "no"
        elif weight.size == 1:
            wkind = "scalar"
        elif weight.shape == pred.shape:
            wkind = "full"
        else:
            dec = _bcast_decomposition(pred.shape, weight.shape)
            if dec is not None:
                p3, w3 = dec
                wkind = "bcast"
            else:
                # TODO(synk): broadcast patterns needing >3 collapsed axis groups
                # are still materialized to full shape before streaming.
                weight = jnp.broadcast_to(weight, pred.shape)
                wkind = "full"

        if self.reduction == "none":
            if wkind == "bcast":
                out = _l1_none_bcast(pred, target, weight, p3, w3, lw, out_dtype)
                if out is not None:
                    return out
                weight = jnp.broadcast_to(weight, pred.shape)   # VMEM-budget fallback
            return _l1_none_flat(pred, target, weight, lw, out_dtype)

        # reduction in ('mean', 'sum')
        denom = jnp.float32(n)
        if wkind == "no":
            loss_sum, _ = _l1_sum_flat(pred, target, None)
        elif wkind == "scalar":
            # sum(|d| * w) == w * sum(|d|): keep only 2 HBM streams.
            loss_sum, _ = _l1_sum_flat(pred, target, None)
            loss_sum = loss_sum * jnp.reshape(weight, ()).astype(jnp.float32)
            denom = _weight_denominator(weight_orig, pred.shape)
        elif wkind == "bcast":
            loss_sum = _l1_sum_bcast(pred, target, weight, p3, w3)
            if loss_sum is None:                                 # VMEM-budget fallback
                loss_sum, _ = _l1_sum_flat(
                    pred, target, jnp.broadcast_to(weight, pred.shape))
            denom = _weight_denominator(weight_orig, pred.shape)
        else:  # full-shape weight
            loss_sum, w_sum = _l1_sum_flat(pred, target, weight)
            denom = (w_sum if weight_orig.shape == pred.shape
                     else _weight_denominator(weight_orig, pred.shape))

        if self.reduction == "sum":
            return (lw * loss_sum).astype(out_dtype)
        return (lw * loss_sum / denom).astype(out_dtype)


# ------------------------------ demo / check ----------------------------------

if __name__ == "__main__":
    key = jax.random.PRNGKey(0)
    k1, k2, k3, k4 = jax.random.split(key, 4)

    N, C, H, W = 2, 4, 16, 16
    pred = jax.random.normal(k1, (N, C, H, W), dtype=jnp.float32)
    target = jax.random.normal(k2, (N, C, H, W), dtype=jnp.float32)
    weight = jax.random.uniform(k3, (N, C, H, W), dtype=jnp.float32)

    # 1) mean (default), no weight
    loss_mean = L1Loss(1.0, "mean")(pred, target)
    jax.block_until_ready(loss_mean)
    assert jnp.allclose(loss_mean, jnp.mean(jnp.abs(pred - target)),
                        rtol=1e-5, atol=1e-6)

    # 2) sum, no weight, loss_weight=0.5
    loss_sum = L1Loss(0.5, "sum")(pred, target)
    assert jnp.allclose(loss_sum, 0.5 * jnp.sum(jnp.abs(pred - target)),
                        rtol=1e-5, atol=1e-4)

    # 3) none, full elementwise weight, loss_weight=2.0
    loss_none = L1Loss(2.0, "none")(pred, target, weight)
    assert loss_none.shape == (N, C, H, W)
    assert jnp.allclose(loss_none, 2.0 * jnp.abs(pred - target) * weight,
                        rtol=1e-5, atol=1e-6)

    # 4) mean, full elementwise weight
    loss_wmean = L1Loss(1.0, "mean")(pred, target, weight)
    ref_wmean = jnp.sum(jnp.abs(pred - target) * weight) / jnp.sum(weight)
    assert jnp.allclose(loss_wmean, ref_wmean, rtol=1e-5, atol=1e-6)

    # 5) mean, channel-broadcast (N,1,H,W) weight (no full-size weight stream)
    w_nc1 = jax.random.uniform(k4, (N, 1, H, W), dtype=jnp.float32)
    loss_cmean = L1Loss(1.0, "mean")(pred, target, w_nc1)
    w_b = jnp.broadcast_to(w_nc1, pred.shape)
    ref_cmean = jnp.sum(jnp.abs(pred - target) * w_b) / (jnp.sum(w_nc1) * C)
    assert jnp.allclose(loss_cmean, ref_cmean, rtol=1e-5, atol=1e-6)

    # 6) none, channel-broadcast weight (in-kernel broadcast, no materialization)
    loss_cnone = L1Loss(1.5, "none")(pred, target, w_nc1)
    assert jnp.allclose(loss_cnone, 1.5 * jnp.abs(pred - target) * w_b,
                        rtol=1e-5, atol=1e-6)

    # 7) none, scalar weight via SMEM (no extra HBM stream)
    w_scalar = jnp.asarray(0.25, dtype=jnp.float32)
    loss_sw = L1Loss(1.0, "none")(pred, target, w_scalar)
    assert jnp.allclose(loss_sw, 0.25 * jnp.abs(pred - target),
                        rtol=1e-5, atol=1e-6)

    # 8) mean, bf16 inputs streamed natively (f32 accumulation)
    loss_bf16 = L1Loss(1.0, "mean")(pred.astype(jnp.bfloat16),
                                    target.astype(jnp.bfloat16))
    ref_bf16 = jnp.mean(jnp.abs(pred.astype(jnp.bfloat16).astype(jnp.float32)
                                - target.astype(jnp.bfloat16).astype(jnp.float32)))
    assert jnp.allclose(loss_bf16.astype(jnp.float32), ref_bf16, rtol=2e-2, atol=2e-2)

    # 9) non-128-aligned size: partial last block (row-masked) + JAX tail
    pu = jax.random.normal(jax.random.PRNGKey(5), (3, 5, 49), dtype=jnp.float32)
    tu = jax.random.normal(jax.random.PRNGKey(6), (3, 5, 49), dtype=jnp.float32)
    lm_u = L1Loss(1.0, "mean")(pu, tu)
    assert jnp.allclose(lm_u, jnp.mean(jnp.abs(pu - tu)), rtol=1e-5, atol=1e-6)
    ln_u = L1Loss(1.0, "none")(pu, tu)
    assert ln_u.shape == pu.shape
    assert jnp.allclose(ln_u, jnp.abs(pu - tu), rtol=1e-5, atol=1e-6)

    # 10) tiny input (< 128 elements): pure-JAX tail path
    pt_ = jax.random.normal(jax.random.PRNGKey(7), (3, 7), dtype=jnp.float32)
    tt_ = jax.random.normal(jax.random.PRNGKey(8), (3, 7), dtype=jnp.float32)
    assert jnp.allclose(L1Loss(1.0, "mean")(pt_, tt_),
                        jnp.mean(jnp.abs(pt_ - tt_)), rtol=1e-5, atol=1e-6)

    # 11) multi-block accumulation (tiny tile forces several grid steps, and the
    #     CORE_PARALLEL split on chips that report >1 TensorCore)
    s11, _ = _l1_sum_flat(pred, target, None, tile_rows=8)
    assert jnp.allclose(s11, jnp.sum(jnp.abs(pred - target)), rtol=1e-5, atol=1e-4)
    o11 = _l1_none_flat(pred, target, None, 1.0, jnp.float32, tile_rows=8)
    assert jnp.allclose(o11, jnp.abs(pred - target), rtol=1e-5, atol=1e-6)

    jax.block_until_ready((loss_mean, loss_none, loss_cmean, o11))
    print("KERNEL_OK")
</pallas_src>

<mosaic_0001>
module attributes {stable_mosaic.version = 11 : i64} {
  func.func @_l1_sum_kernel(%arg0: i32, %arg1: memref<16x128xf32, #tpu.memory_space<vmem>>, %arg2: memref<16x128xf32, #tpu.memory_space<vmem>>, %arg3: memref<1x128xf32, #tpu.memory_space<vmem>>) attributes {dimension_semantics = [#tpu.dimension_semantics<arbitrary>], iteration_bounds = array<i64: 1>, scalar_prefetch = 0 : i64, scratch_operands = 0 : i64, tpu.core_type = #tpu.core_type<tc>, window_params = [{transform_indices = @transform_0, window_bounds = array<i64: 16, 128>}, {transform_indices = @transform_1, window_bounds = array<i64: 16, 128>}, {pipeline_mode = #tpu.pipeline_mode<synchronous>, transform_indices = @transform_2, window_bounds = array<i64: 1, 128>}]} {
    %c0_i32 = arith.constant 0 : i32
    %0 = arith.cmpi eq, %arg0, %c0_i32 : i32
    %1 = arith.extui %0 : i1 to i32
    %c0_i32_0 = arith.constant 0 : i32
    %2 = arith.cmpi ne, %1, %c0_i32_0 : i32
    scf.if %2 {
      %cst_8 = arith.constant 0.000000e+00 : f32
      %12 = vector.broadcast %cst_8 : f32 to vector<1x128xf32>
      %c0_9 = arith.constant 0 : index
      %c0_10 = arith.constant 0 : index
      %13 = vector.load %arg3[%c0_9, %c0_10] : memref<1x128xf32, #tpu.memory_space<vmem>>, vector<1x128xf32>
      tpu.vector_store %arg3[%c0_9, %c0_10], %12 {strides = array<i32>} : memref<1x128xf32, #tpu.memory_space<vmem>>, vector<1x128xf32>,
    } else {
    }
    %c0 = arith.constant 0 : index
    %c0_1 = arith.constant 0 : index
    %3 = vector.load %arg1[%c0, %c0_1] : memref<16x128xf32, #tpu.memory_space<vmem>>, vector<16x128xf32>
    %c0_2 = arith.constant 0 : index
    %c0_3 = arith.constant 0 : index
    %4 = vector.load %arg2[%c0_2, %c0_3] : memref<16x128xf32, #tpu.memory_space<vmem>>, vector<16x128xf32>
    %5 = arith.subf %3, %4 : vector<16x128xf32>
    %6 = math.absf %5 : vector<16x128xf32>
    %c0_4 = arith.constant 0 : index
    %c0_5 = arith.constant 0 : index
    %7 = vector.load %arg3[%c0_4, %c0_5] : memref<1x128xf32, #tpu.memory_space<vmem>>, vector<1x128xf32>
    %cst = arith.constant dense<0.000000e+00> : vector<128xf32>
    %8 = vector.multi_reduction <add>, %6, %cst [0] : vector<16x128xf32> to vector<128xf32>
    %9 = vector.shape_cast %8 : vector<128xf32> to vector<1x128xf32>
    %10 = arith.addf %7, %9 : vector<1x128xf32>
    %c0_6 = arith.constant 0 : index
    %c0_7 = arith.constant 0 : index
    %11 = vector.load %arg3[%c0_6, %c0_7] : memref<1x128xf32, #tpu.memory_space<vmem>>, vector<1x128xf32>
    tpu.vector_store %arg3[%c0_6, %c0_7], %10 {strides = array<i32>} : memref<1x128xf32, #tpu.memory_space<vmem>>, vector<1x128xf32>,
    return
  }
  func.func @transform_0(%arg0: i32) -> (i32, i32) {
    %c0_i32 = arith.constant 0 : i32
    %c0_i32_0 = arith.constant 0 : i32
    return %arg0, %c0_i32 : i32, i32
  }
  func.func @transform_1(%arg0: i32) -> (i32, i32) {
    %c0_i32 = arith.constant 0 : i32
    %c0_i32_0 = arith.constant 0 : i32
    return %arg0, %c0_i32 : i32, i32
  }
  func.func @transform_2(%arg0: i32) -> (i32, i32) {
    %c0_i32 = arith.constant 0 : i32
    %c0_i32_0 = arith.constant 0 : i32
    %c0_i32_1 = arith.constant 0 : i32
    return %c0_i32, %c0_i32_0 : i32, i32
  }
}

</mosaic_0001>

<llo_original>
// kernel: tpu_custom_call.1
$region0: #{tpu_custom_call.1}
  #allocation0 [shape = 'u32[]', space=smem, size = 0x4, offset = 0x4, fixed_abs, tag = 'smem constant byte address 0x4 - core index']
  #allocation1 [shape = 'u32[144,128]{1,0:T(1,128)}', space=vmem, size = 0x12000, scoped, tag = 'internal scratch']
  %s0 = inlined_call_operand.hbm [shape: f32[16,128], index: 0, kind: input, shape index: {}]
  %s1 = inlined_call_operand.hbm [shape: f32[16,128], index: 1, kind: input, shape index: {}]
  %s2 = inlined_call_operand.hbm [shape: f32[1,128], index: 2, kind: output, shape index: {}]
  %s3 = sld [smem:[#allocation0]]
  $region30: #{tpu_custom_call.1} parent=0
    _
  %s5 = ssub.s32 1, %s3
  %s6 = scalar_select 0, %s5, %s3
  $region1: #{tpu_custom_call.1} parent=0
    #allocation2 [shape = 'u8[8192]{0}', space=vmem, size = 0x2000, scoped, tag = 'input window, operand 0, single buffered']
    #allocation3 [shape = 's32[1]{0}', space=sflag, size = 0x4, scoped, tag = 'scoped memory for tpu_custom_call.1']
    #allocation4 [shape = 's32[1]{0}', space=sflag, size = 0x4, scoped, tag = 'scoped memory for tpu_custom_call.1']
    #allocation5 [shape = 'u8[8192]{0}', space=vmem, size = 0x2000, scoped, tag = 'input window, operand 1, single buffered']
    #allocation6 [shape = 's32[1]{0}', space=sflag, size = 0x4, scoped, tag = 'scoped memory for tpu_custom_call.1']
    #allocation7 [shape = 'u8[512]{0}', space=vmem, size = 0x400, scoped, tag = 'output window, operand 0, single buffered']
    %7 = vsyncpa [#allocation3], 0
    %8 = vsyncpa [#allocation6], 0
    %9 = vsyncpa [#allocation4], 0
    // Predicated region
    $region2: #{tpu_custom_call.1} parent=1 // pred_check
      _
    $region3: #{tpu_custom_call.1} parent=1 // pred_check_branch
      %11 = sbr.rel (0) target = $region5
    $region4: #{tpu_custom_call.1} parent=1 // pred_region
      %s13 = ssub.s32 256, 256
      %14 = vsyncadd [#allocation3], %s13
      %s15 = sshll.u32 [#allocation2], 4
      %s16 = int_to_ptr.vmem [resolvable:$true] %s15
      %21 = dma.hbm_to_vmem [thread:$0]  %s0, 256, %s16, [#allocation3], 128, 128, 8
    $region5: #{tpu_custom_call.1} parent=1 // pred_fallthru
      _
    // Predicated region
    $region6: #{tpu_custom_call.1} parent=1 // pred_check
      _
    $region7: #{tpu_custom_call.1} parent=1 // pred_check_branch
      %23 = sbr.rel (0) target = $region9
    $region8: #{tpu_custom_call.1} parent=1 // pred_region
      %s25 = ssub.s32 256, 256
      %26 = vsyncadd [#allocation6], %s25
      %s27 = sshll.u32 [#allocation5], 4
      %s28 = int_to_ptr.vmem [resolvable:$true] %s27
      %33 = dma.hbm_to_vmem [thread:$0]  %s1, 256, %s28, [#allocation6], 128, 128, 8
    $region9: #{tpu_custom_call.1} parent=1 // pred_fallthru
      _
    // Predicated region
    $region10: #{tpu_custom_call.1} parent=1 // pred_check
      _
    $region11: #{tpu_custom_call.1} parent=1 // pred_check_branch
      %35 = sbr.rel (0) target = $region13
    $region12: #{tpu_custom_call.1} parent=1 // pred_region
      %36 = dma.done [#allocation3], 256
    $region13: #{tpu_custom_call.1} parent=1 // pred_fallthru
      _
    // Predicated region
    $region14: #{tpu_custom_call.1} parent=1 // pred_check
      _
    $region15: #{tpu_custom_call.1} parent=1 // pred_check_branch
      %38 = sbr.rel (0) target = $region17
    $region16: #{tpu_custom_call.1} parent=1 // pred_region
      %39 = dma.done [#allocation6], 256
    $region17: #{tpu_custom_call.1} parent=1 // pred_fallthru
      _
    %p40 = scmp.eq.s32.totalorder 0, 0
    // Predicated region
    $region18: #{tpu_custom_call.1} parent=1 // pred_check
      %p41 = pneg %p40
    $region19: #{tpu_custom_call.1} parent=1 // pred_check_branch
      %43 = sbr.rel (%p41) target = $region21
    $region20: #{tpu_custom_call.1} parent=1 // pred_region
      %44 = vst [vmem:[#allocation7] sm:$0x1] 0.0
    $region21: #{tpu_custom_call.1} parent=1 // pred_fallthru
      _
    %v45 = vld [vmem:[#allocation2] sm:$0xff]
    %v46 = vld [vmem:[#allocation2 + $0x8] sm:$0xff]
    %v47 = vld [vmem:[#allocation5] sm:$0xff]
    %v48 = vld [vmem:[#allocation5 + $0x8] sm:$0xff]
    %v49 = vsub.f32 %v45, %v47
    %v50 = vsub.f32 %v46, %v48
    %v51 = vand.u32 2147483647, %v49
    %v52 = vand.u32 2147483647, %v50
    %v53 = vld [vmem:[#allocation7] sm:$0x1]
    %v54 = vadd.f32 %v51, %v52
    %v55 = vrot.slane %v54, 4
    %v56 = vadd.f32 %v54, %v55
    %v57 = vrot.slane %v56, 2
    %v58 = vadd.f32 %v56, %v57
    %v59 = vrot.slane %v58, 1
    %v60 = vadd.f32 %v58, %v59
    %v61 = vadd.f32 %v53, %v60
    %62 = vst [vmem:[#allocation7] sm:$0x1] %v61
    // Predicated region
    $region22: #{tpu_custom_call.1} parent=1 // pred_check
      _
    $region23: #{tpu_custom_call.1} parent=1 // pred_check_branch
      %64 = sbr.rel (0) target = $region25
    $region24: #{tpu_custom_call.1} parent=1 // pred_region
      %s66 = ssub.s32 16, 16
      %67 = vsyncadd [#allocation4], %s66
      %s69 = sshll.u32 [#allocation7], 4
      %s70 = int_to_ptr.vmem [resolvable:$true] %s69
      %72 = dma.vmem_to_hbm [thread:$0]  %s70, 16, %s2, [#allocation4]
    $region25: #{tpu_custom_call.1} parent=1 // pred_fallthru
      _
    // Predicated region
    $region26: #{tpu_custom_call.1} parent=1 // pred_check
      _
    $region27: #{tpu_custom_call.1} parent=1 // pred_check_branch
      %74 = sbr.rel (0) target = $region29
    $region28: #{tpu_custom_call.1} parent=1 // pred_region
      %75 = dma.done [#allocation4], 16
    $region29: #{tpu_custom_call.1} parent=1 // pred_fallthru
      _
    %76 = vsyncpa [#allocation3], 1
    %77 = vsyncpa [#allocation6], 1
    %78 = vsyncpa [#allocation4], 1

</llo_original>
